<compile_context>
chip_gen: v6e
topology: v6e:2x2x1
jax: 0.10.0
libtpu: 0.0.40
codegen_flags: <defaults>
</compile_context>

<pallas_src>
import functools

import jax
import jax.numpy as jnp
from jax import lax
from jax.experimental import pallas as pl
from jax.experimental.pallas import tpu as pltpu

ALPHA = 0.5
BETA = 0.5
SMOOTH = 1.0

_MAX_HW_TILE = 512 * 128      # 64K lanes: >=128 KiB contiguous DMA per f32 row
_MAX_BLOCK_ROWS = 4096        # bounds the (rows,1) accumulator RMW + its VMEM


def _dev_kind():
    try:
        return jax.devices()[0].device_kind.lower()
    except Exception:
        return ""


def _hw_budget():
    """(vmem_limit_bytes, per-input tile byte target, shard rows across cores)."""
    kind = _dev_kind()
    if "7" in kind:
        # v7x: 64 MiB VMEM per TensorCore, 2 TensorCores per chip.
        return 48 * 1024 * 1024, 2 * 1024 * 1024, True
    # v5e / v6e: 128 MiB physical VMEM, 1 TensorCore.
    return 64 * 1024 * 1024, 4 * 1024 * 1024, False


def _sublane(dtype):
    # Native sublane packing: 8 rows for 32-bit, 16 for 16-bit, 32 for 8-bit.
    return max(8, 32 // jnp.dtype(dtype).itemsize)


def _round_up(x, m):
    return ((x + m - 1) // m) * m


def _tversky_kernel(p_ref, g_ref, score_ref, s_pg, s_p, s_g,
                    *, alpha, beta, smooth, hw_real, hw_tile, mask_lanes):
    k = pl.program_id(1)

    @pl.when(k == 0)
    def _():
        s_pg[...] = jnp.zeros_like(s_pg)
        s_p[...] = jnp.zeros_like(s_p)
        s_g[...] = jnp.zeros_like(s_g)

    # Native-dtype tiles arrive via DMA; cast to f32 in VMEM.
    p0 = p_ref[...].astype(jnp.float32)
    g0 = g_ref[...].astype(jnp.float32)

    if mask_lanes:
        # Only generated when HW is not a multiple of hw_tile: zero the
        # out-of-range lanes (a handful of VPU ops) instead of paying a full
        # read+write jnp.pad pass over both tensors in HBM.
        lane = lax.broadcasted_iota(jnp.int32, p0.shape, 1)
        valid = (k * hw_tile + lane) < hw_real
        p0 = jnp.where(valid, p0, 0.0)
        g0 = jnp.where(valid, g0, 0.0)

    # Algebraic simplification -> only one full-tile product is needed:
    #   tp = sum(p*g), fp = alpha*(sum(p)-tp), fn = beta*(sum(g)-tp)
    s_pg[...] += jnp.sum(p0 * g0, axis=1, keepdims=True)
    s_p[...] += jnp.sum(p0, axis=1, keepdims=True)
    s_g[...] += jnp.sum(g0, axis=1, keepdims=True)

    @pl.when(k == pl.num_programs(1) - 1)
    def _():
        tp = s_pg[...]
        fp = alpha * (s_p[...] - tp)
        fn = beta * (s_g[...] - tp)
        score_ref[...] = 1.0 - (tp + smooth) / (tp + fp + fn + smooth)


def _choose_tiles(nc, hw, sub, itemsize, target_tile_bytes, want_two_row_tiles):
    # Lane (HW) axis: one long, lane-dense, contiguous stretch per DMA row.
    hw_tile = min(_round_up(max(hw, 1), 128), _MAX_HW_TILE)

    # Row axis: fill the per-step byte budget; keep the sublane dim aligned to
    # the native packing of the input dtypes.
    block_rows = max(sub, target_tile_bytes // (hw_tile * itemsize))
    block_rows = min(block_rows, _MAX_BLOCK_ROWS)
    block_rows = max(sub, (block_rows // sub) * sub)

    if nc <= block_rows:
        block_rows = nc                        # full-extent row block (always legal)
        if want_two_row_tiles and nc >= 2 * sub:
            # Give both v7x TensorCores at least one row tile.
            half = _round_up((nc + 1) // 2, sub)
            if half < nc:
                block_rows = half
    return block_rows, hw_tile


def tversky_loss_v3(inputs, target, *, alpha=ALPHA, beta=BETA, smooth=SMOOTH):
    """Tversky loss matching TverskyLossV3 defaults.

    inputs, target: (N, C, *spatial), same shape.
    Returns scalar loss = mean over (N, C) of per-class Tversky scores.
    """
    assert inputs.shape == target.shape, (
        f"ground truth has differing shape ({target.shape}) "
        f"from input ({inputs.shape})")
    # TODO(synk): softmax / to_onehot_target / include_background=False paths
    # of the module are not exercised by the default config and are omitted.
    N, C = inputs.shape[:2]
    NC = N * C
    HW = 1
    for d in inputs.shape[2:]:
        HW *= d

    # Metadata-only reshape; native dtypes are preserved so the kernel DMA
    # moves the minimum number of HBM bytes (no padding round-trip).
    p = inputs.reshape(NC, HW)
    g = target.reshape(NC, HW)

    vmem_limit, target_tile_bytes, two_core = _hw_budget()
    sub = max(_sublane(p.dtype), _sublane(g.dtype))
    itemsize = max(jnp.dtype(p.dtype).itemsize, jnp.dtype(g.dtype).itemsize)

    block_rows, hw_tile = _choose_tiles(NC, HW, sub, itemsize,
                                        target_tile_bytes, two_core)
    n_row_tiles = pl.cdiv(NC, block_rows)
    n_hw_tiles = pl.cdiv(HW, hw_tile)
    mask_lanes = (HW % hw_tile) != 0

    kernel = functools.partial(
        _tversky_kernel, alpha=float(alpha), beta=float(beta),
        smooth=float(smooth), hw_real=HW, hw_tile=hw_tile,
        mask_lanes=mask_lanes)

    cost = pl.CostEstimate(
        flops=4 * NC * HW,
        transcendentals=0,
        bytes_accessed=NC * HW * (jnp.dtype(p.dtype).itemsize
                                  + jnp.dtype(g.dtype).itemsize) + 4 * NC)

    def _run(dim_sems):
        return pl.pallas_call(
            kernel,
            out_shape=jax.ShapeDtypeStruct((n_row_tiles * block_rows, 1),
                                           jnp.float32),
            grid_spec=pltpu.PrefetchScalarGridSpec(
                num_scalar_prefetch=0,
                grid=(n_row_tiles, n_hw_tiles),
                in_specs=[
                    pl.BlockSpec((block_rows, hw_tile), lambda i, k: (i, k)),
                    pl.BlockSpec((block_rows, hw_tile), lambda i, k: (i, k)),
                ],
                out_specs=pl.BlockSpec((block_rows, 1), lambda i, k: (i, 0)),
                scratch_shapes=[
                    pltpu.VMEM((block_rows, 1), jnp.float32),  # sum(p*g)
                    pltpu.VMEM((block_rows, 1), jnp.float32),  # sum(p)
                    pltpu.VMEM((block_rows, 1), jnp.float32),  # sum(g)
                ],
            ),
            compiler_params=pltpu.CompilerParams(
                dimension_semantics=dim_sems,
                vmem_limit_bytes=vmem_limit),
            cost_estimate=cost,
        )(p, g)

    dim_sems = ("parallel", "arbitrary")
    if (two_core and n_row_tiles >= 2
            and hasattr(pltpu, "CORE_PARALLEL") and hasattr(pltpu, "ARBITRARY")):
        # v7x: explicitly shard the row-tile axis across the 2 TensorCores.
        dim_sems = (pltpu.CORE_PARALLEL, pltpu.ARBITRARY)
    try:
        scores = _run(dim_sems)
    except Exception:
        if dim_sems == ("parallel", "arbitrary"):
            raise
        scores = _run(("parallel", "arbitrary"))

    # A ragged last row tile (if any) produced garbage rows; slice them off
    # before the mean over the real (N*C) per-class scores.
    return jnp.mean(scores[:NC, 0])


def _reference(inputs, target, alpha=ALPHA, beta=BETA, smooth=SMOOTH):
    p0 = inputs.astype(jnp.float32)
    g0 = target.astype(jnp.float32)
    p1 = 1.0 - p0
    g1 = 1.0 - g0
    axes = tuple(range(2, inputs.ndim))
    tp = jnp.sum(p0 * g0, axes)
    fp = alpha * jnp.sum(p0 * g1, axes)
    fn = beta * jnp.sum(p1 * g0, axes)
    score = 1.0 - (tp + smooth) / (tp + fp + fn + smooth)
    return jnp.mean(score)


if __name__ == "__main__":
    key = jax.random.PRNGKey(0)
    k1, k2 = jax.random.split(key)

    N, C, H, W = 2, 4, 16, 16
    # Predictions in [0, 1] (softmax=False expects probability-like inputs),
    # targets are binary masks per channel.
    x = jax.random.uniform(k1, (N, C, H, W), dtype=jnp.float32)
    t = (jax.random.uniform(k2, (N, C, H, W)) > 0.5).astype(jnp.float32)

    loss = jax.block_until_ready(tversky_loss_v3(x, t))
    ref = jax.block_until_ready(_reference(x, t))

    assert jnp.allclose(loss, ref, rtol=1e-5, atol=1e-5), (loss, ref)
    print("KERNEL_OK")
</pallas_src>

<mosaic_0001>
module attributes {stable_mosaic.version = 11 : i64} {
  func.func @_tversky_kernel(%arg0: i32, %arg1: i32, %arg2: memref<8x256xf32, #tpu.memory_space<vmem>>, %arg3: memref<8x256xf32, #tpu.memory_space<vmem>>, %arg4: memref<8x1xf32, #tpu.memory_space<vmem>>, %arg5: memref<8x1xf32, #tpu.memory_space<vmem>>, %arg6: memref<8x1xf32, #tpu.memory_space<vmem>>, %arg7: memref<8x1xf32, #tpu.memory_space<vmem>>) attributes {dimension_semantics = [#tpu.dimension_semantics<parallel>, #tpu.dimension_semantics<arbitrary>], iteration_bounds = array<i64: 1, 1>, scalar_prefetch = 0 : i64, scratch_operands = 3 : i64, tpu.core_type = #tpu.core_type<tc>, window_params = [{transform_indices = @transform_0, window_bounds = array<i64: 8, 256>}, {transform_indices = @transform_1, window_bounds = array<i64: 8, 256>}, {transform_indices = @transform_2, window_bounds = array<i64: 8, 1>}]} {
    %c0_i32 = arith.constant 0 : i32
    %0 = arith.cmpi eq, %arg1, %c0_i32 : i32
    %1 = arith.extui %0 : i1 to i32
    %c0_i32_0 = arith.constant 0 : i32
    %2 = arith.cmpi ne, %1, %c0_i32_0 : i32
    scf.if %2 {
      %cst_20 = arith.constant 0.000000e+00 : f32
      %24 = vector.broadcast %cst_20 : f32 to vector<8x1xf32>
      %c0_21 = arith.constant 0 : index
      %c0_22 = arith.constant 0 : index
      %25 = vector.load %arg5[%c0_21, %c0_22] : memref<8x1xf32, #tpu.memory_space<vmem>>, vector<8x1xf32>
      tpu.vector_store %arg5[%c0_21, %c0_22], %24 {strides = array<i32>} : memref<8x1xf32, #tpu.memory_space<vmem>>, vector<8x1xf32>,
      %cst_23 = arith.constant 0.000000e+00 : f32
      %26 = vector.broadcast %cst_23 : f32 to vector<8x1xf32>
      %c0_24 = arith.constant 0 : index
      %c0_25 = arith.constant 0 : index
      %27 = vector.load %arg6[%c0_24, %c0_25] : memref<8x1xf32, #tpu.memory_space<vmem>>, vector<8x1xf32>
      tpu.vector_store %arg6[%c0_24, %c0_25], %26 {strides = array<i32>} : memref<8x1xf32, #tpu.memory_space<vmem>>, vector<8x1xf32>,
      %cst_26 = arith.constant 0.000000e+00 : f32
      %28 = vector.broadcast %cst_26 : f32 to vector<8x1xf32>
      %c0_27 = arith.constant 0 : index
      %c0_28 = arith.constant 0 : index
      %29 = vector.load %arg7[%c0_27, %c0_28] : memref<8x1xf32, #tpu.memory_space<vmem>>, vector<8x1xf32>
      tpu.vector_store %arg7[%c0_27, %c0_28], %28 {strides = array<i32>} : memref<8x1xf32, #tpu.memory_space<vmem>>, vector<8x1xf32>,
    } else {
    }
    %c0 = arith.constant 0 : index
    %c0_1 = arith.constant 0 : index
    %3 = vector.load %arg2[%c0, %c0_1] : memref<8x256xf32, #tpu.memory_space<vmem>>, vector<8x256xf32>
    %c0_2 = arith.constant 0 : index
    %c0_3 = arith.constant 0 : index
    %4 = vector.load %arg3[%c0_2, %c0_3] : memref<8x256xf32, #tpu.memory_space<vmem>>, vector<8x256xf32>
    %c0_4 = arith.constant 0 : index
    %c0_5 = arith.constant 0 : index
    %5 = vector.load %arg5[%c0_4, %c0_5] : memref<8x1xf32, #tpu.memory_space<vmem>>, vector<8x1xf32>
    %6 = arith.mulf %3, %4 : vector<8x256xf32>
    %cst = arith.constant dense<0.000000e+00> : vector<8xf32>
    %7 = vector.multi_reduction <add>, %6, %cst [1] : vector<8x256xf32> to vector<8xf32>
    %8 = vector.shape_cast %7 : vector<8xf32> to vector<8x1xf32>
    %9 = arith.addf %5, %8 : vector<8x1xf32>
    %c0_6 = arith.constant 0 : index
    %c0_7 = arith.constant 0 : index
    %10 = vector.load %arg5[%c0_6, %c0_7] : memref<8x1xf32, #tpu.memory_space<vmem>>, vector<8x1xf32>
    tpu.vector_store %arg5[%c0_6, %c0_7], %9 {strides = array<i32>} : memref<8x1xf32, #tpu.memory_space<vmem>>, vector<8x1xf32>,
    %c0_8 = arith.constant 0 : index
    %c0_9 = arith.constant 0 : index
    %11 = vector.load %arg6[%c0_8, %c0_9] : memref<8x1xf32, #tpu.memory_space<vmem>>, vector<8x1xf32>
    %cst_10 = arith.constant dense<0.000000e+00> : vector<8xf32>
    %12 = vector.multi_reduction <add>, %3, %cst_10 [1] : vector<8x256xf32> to vector<8xf32>
    %13 = vector.shape_cast %12 : vector<8xf32> to vector<8x1xf32>
    %14 = arith.addf %11, %13 : vector<8x1xf32>
    %c0_11 = arith.constant 0 : index
    %c0_12 = arith.constant 0 : index
    %15 = vector.load %arg6[%c0_11, %c0_12] : memref<8x1xf32, #tpu.memory_space<vmem>>, vector<8x1xf32>
    tpu.vector_store %arg6[%c0_11, %c0_12], %14 {strides = array<i32>} : memref<8x1xf32, #tpu.memory_space<vmem>>, vector<8x1xf32>,
    %c0_13 = arith.constant 0 : index
    %c0_14 = arith.constant 0 : index
    %16 = vector.load %arg7[%c0_13, %c0_14] : memref<8x1xf32, #tpu.memory_space<vmem>>, vector<8x1xf32>
    %cst_15 = arith.constant dense<0.000000e+00> : vector<8xf32>
    %17 = vector.multi_reduction <add>, %4, %cst_15 [1] : vector<8x256xf32> to vector<8xf32>
    %18 = vector.shape_cast %17 : vector<8xf32> to vector<8x1xf32>
    %19 = arith.addf %16, %18 : vector<8x1xf32>
    %c0_16 = arith.constant 0 : index
    %c0_17 = arith.constant 0 : index
    %20 = vector.load %arg7[%c0_16, %c0_17] : memref<8x1xf32, #tpu.memory_space<vmem>>, vector<8x1xf32>
    tpu.vector_store %arg7[%c0_16, %c0_17], %19 {strides = array<i32>} : memref<8x1xf32, #tpu.memory_space<vmem>>, vector<8x1xf32>,
    %c0_i32_18 = arith.constant 0 : i32
    %21 = arith.cmpi eq, %arg1, %c0_i32_18 : i32
    %22 = arith.extui %21 : i1 to i32
    %c0_i32_19 = arith.constant 0 : i32
    %23 = arith.cmpi ne, %22, %c0_i32_19 : i32
    scf.if %23 {
      %c0_20 = arith.constant 0 : index
      %c0_21 = arith.constant 0 : index
      %24 = vector.load %arg5[%c0_20, %c0_21] : memref<8x1xf32, #tpu.memory_space<vmem>>, vector<8x1xf32>
      %c0_22 = arith.constant 0 : index
      %c0_23 = arith.constant 0 : index
      %25 = vector.load %arg6[%c0_22, %c0_23] : memref<8x1xf32, #tpu.memory_space<vmem>>, vector<8x1xf32>
      %26 = arith.subf %25, %24 : vector<8x1xf32>
      %cst_24 = arith.constant 5.000000e-01 : f32
      %27 = vector.broadcast %cst_24 : f32 to vector<8x1xf32>
      %28 = arith.mulf %27, %26 : vector<8x1xf32>
      %c0_25 = arith.constant 0 : index
      %c0_26 = arith.constant 0 : index
      %29 = vector.load %arg7[%c0_25, %c0_26] : memref<8x1xf32, #tpu.memory_space<vmem>>, vector<8x1xf32>
      %30 = arith.subf %29, %24 : vector<8x1xf32>
      %cst_27 = arith.constant 5.000000e-01 : f32
      %31 = vector.broadcast %cst_27 : f32 to vector<8x1xf32>
      %32 = arith.mulf %31, %30 : vector<8x1xf32>
      %cst_28 = arith.constant 1.000000e+00 : f32
      %33 = vector.broadcast %cst_28 : f32 to vector<8x1xf32>
      %34 = arith.addf %24, %33 : vector<8x1xf32>
      %35 = arith.addf %24, %28 : vector<8x1xf32>
      %36 = arith.addf %35, %32 : vector<8x1xf32>
      %cst_29 = arith.constant 1.000000e+00 : f32
      %37 = vector.broadcast %cst_29 : f32 to vector<8x1xf32>
      %38 = arith.addf %36, %37 : vector<8x1xf32>
      %39 = arith.divf %34, %38 : vector<8x1xf32>
      %cst_30 = arith.constant 1.000000e+00 : f32
      %40 = vector.broadcast %cst_30 : f32 to vector<8x1xf32>
      %41 = arith.subf %40, %39 : vector<8x1xf32>
      %c0_31 = arith.constant 0 : index
      %c0_32 = arith.constant 0 : index
      %42 = vector.load %arg4[%c0_31, %c0_32] : memref<8x1xf32, #tpu.memory_space<vmem>>, vector<8x1xf32>
      tpu.vector_store %arg4[%c0_31, %c0_32], %41 {strides = array<i32>} : memref<8x1xf32, #tpu.memory_space<vmem>>, vector<8x1xf32>,
    } else {
    }
    return
  }
  func.func @transform_0(%arg0: i32, %arg1: i32) -> (i32, i32) {
    %c0_i32 = arith.constant 0 : i32
    return %arg0, %arg1 : i32, i32
  }
  func.func @transform_1(%arg0: i32, %arg1: i32) -> (i32, i32) {
    %c0_i32 = arith.constant 0 : i32
    return %arg0, %arg1 : i32, i32
  }
  func.func @transform_2(%arg0: i32, %arg1: i32) -> (i32, i32) {
    %c0_i32 = arith.constant 0 : i32
    %c0_i32_0 = arith.constant 0 : i32
    return %arg0, %c0_i32 : i32, i32
  }
}

</mosaic_0001>

<llo_original>
// kernel: tpu_custom_call.1
$region0: #{tpu_custom_call.1}
  #allocation0 [shape = 'u32[]', space=smem, size = 0x4, offset = 0x4, fixed_abs, tag = 'smem constant byte address 0x4 - core index']
  #allocation1 [shape = 'u32[144,128]{1,0:T(1,128)}', space=vmem, size = 0x12000, scoped, tag = 'internal scratch']
  #allocation2 [shape = 'f32[8,1]{1,0:T(8,128)}', space=vmem, size = 0x1000, scoped, tag = 'scratch operand']
  #allocation3 [shape = 'f32[8,1]{1,0:T(8,128)}', space=vmem, size = 0x1000, scoped, tag = 'scratch operand']
  #allocation4 [shape = 'f32[8,1]{1,0:T(8,128)}', space=vmem, size = 0x1000, scoped, tag = 'scratch operand']
  %s0 = inlined_call_operand.hbm [shape: f32[8,256], index: 0, kind: input, shape index: {}]
  %s1 = inlined_call_operand.hbm [shape: f32[8,256], index: 1, kind: input, shape index: {}]
  %s2 = inlined_call_operand.vmem [shape: f32[8,1], index: 2, kind: output, shape index: {}]
  %s3 = sld [smem:[#allocation0]]
  $region34: #{tpu_custom_call.1} parent=0
    _
  %s5 = ssub.s32 1, %s3
  %s6 = scalar_select 0, %s5, %s3
  $region1: #{tpu_custom_call.1} parent=0
    #allocation5 [shape = 'u8[8192]{0}', space=vmem, size = 0x2000, scoped, tag = 'input window, operand 0, single buffered']
    #allocation6 [shape = 's32[1]{0}', space=sflag, size = 0x4, scoped, tag = 'scoped memory for tpu_custom_call.1']
    #allocation7 [shape = 'u8[8192]{0}', space=vmem, size = 0x2000, scoped, tag = 'input window, operand 1, single buffered']
    #allocation8 [shape = 's32[1]{0}', space=sflag, size = 0x4, scoped, tag = 'scoped memory for tpu_custom_call.1']
    %7 = vsyncpa [#allocation6], 0
    %8 = vsyncpa [#allocation8], 0
    // Predicated region
    $region2: #{tpu_custom_call.1} parent=1 // pred_check
      _
    $region3: #{tpu_custom_call.1} parent=1 // pred_check_branch
      %10 = sbr.rel (0) target = $region5
    $region4: #{tpu_custom_call.1} parent=1 // pred_region
      %s12 = ssub.s32 256, 256
      %13 = vsyncadd [#allocation6], %s12
      %s15 = sshll.u32 [#allocation5], 4
      %s16 = int_to_ptr.vmem [resolvable:$true] %s15
      %18 = dma.hbm_to_vmem [thread:$0]  %s0, 256, %s16, [#allocation6]
    $region5: #{tpu_custom_call.1} parent=1 // pred_fallthru
      _
    // Predicated region
    $region6: #{tpu_custom_call.1} parent=1 // pred_check
      _
    $region7: #{tpu_custom_call.1} parent=1 // pred_check_branch
      %20 = sbr.rel (0) target = $region9
    $region8: #{tpu_custom_call.1} parent=1 // pred_region
      %s22 = ssub.s32 256, 256
      %23 = vsyncadd [#allocation8], %s22
      %s25 = sshll.u32 [#allocation7], 4
      %s26 = int_to_ptr.vmem [resolvable:$true] %s25
      %28 = dma.hbm_to_vmem [thread:$0]  %s1, 256, %s26, [#allocation8]
    $region9: #{tpu_custom_call.1} parent=1 // pred_fallthru
      _
    // Predicated region
    $region10: #{tpu_custom_call.1} parent=1 // pred_check
      _
    $region11: #{tpu_custom_call.1} parent=1 // pred_check_branch
      %30 = sbr.rel (0) target = $region13
    $region12: #{tpu_custom_call.1} parent=1 // pred_region
      %31 = dma.done [#allocation6], 256
    $region13: #{tpu_custom_call.1} parent=1 // pred_fallthru
      _
    // Predicated region
    $region14: #{tpu_custom_call.1} parent=1 // pred_check
      _
    $region15: #{tpu_custom_call.1} parent=1 // pred_check_branch
      %33 = sbr.rel (0) target = $region17
    $region16: #{tpu_custom_call.1} parent=1 // pred_region
      %34 = dma.done [#allocation8], 256
    $region17: #{tpu_custom_call.1} parent=1 // pred_fallthru
      _
    %p35 = scmp.eq.s32.totalorder 0, 0
    // Predicated region
    $region18: #{tpu_custom_call.1} parent=1 // pred_check
      %p36 = pneg %p35
    $region19: #{tpu_custom_call.1} parent=1 // pred_check_branch
      %38 = sbr.rel (%p36) target = $region21
    $region20: #{tpu_custom_call.1} parent=1 // pred_region
      %vm39 = vcmask 7168
      %40 = vst.msk [vmem:[#allocation2] sm:$0xff] %vm39, 0.0
      %41 = vst.msk [vmem:[#allocation3] sm:$0xff] %vm39, 0.0
      %42 = vst.msk [vmem:[#allocation4] sm:$0xff] %vm39, 0.0
    $region21: #{tpu_custom_call.1} parent=1 // pred_fallthru
      _
    %v43 = vld [vmem:[#allocation5] sm:$0xff]
    %v44 = vld [vmem:[#allocation5 + $0x8] sm:$0xff]
    %v45 = vld [vmem:[#allocation7] sm:$0xff]
    %v46 = vld [vmem:[#allocation7 + $0x8] sm:$0xff]
    %v47 = vld [vmem:[#allocation2] sm:$0xff]
    %v48 = vmul.f32 %v43, %v45
    %v49 = vmul.f32 %v44, %v46
    %v50 = vadd.f32 %v48, %v49
    %51 = vadd.xlane.f32.xlu0 %v50
    %v52 = vpop.xlane.xlu0 %51
    %v53 = vadd.f32 %v47, %v52
    %vm54 = vcmask 7168
    %55 = vst.msk [vmem:[#allocation2] sm:$0xff] %vm54, %v53
    %v56 = vld [vmem:[#allocation3] sm:$0xff]
    %v57 = vadd.f32 %v43, %v44
    %58 = vadd.xlane.f32.xlu0 %v57
    %v59 = vpop.xlane.xlu0 %58
    %v60 = vadd.f32 %v56, %v59
    %61 = vst.msk [vmem:[#allocation3] sm:$0xff] %vm54, %v60
    %v62 = vld [vmem:[#allocation4] sm:$0xff]
    %v63 = vadd.f32 %v45, %v46
    %64 = vadd.xlane.f32.xlu0 %v63
    %v65 = vpop.xlane.xlu0 %64
    %v66 = vadd.f32 %v62, %v65
    %67 = vst.msk [vmem:[#allocation4] sm:$0xff] %vm54, %v66
    // Predicated region
    $region22: #{tpu_custom_call.1} parent=1 // pred_check
      %p68 = pneg %p35
    $region23: #{tpu_custom_call.1} parent=1 // pred_check_branch
      %70 = sbr.rel (%p68) target = $region25
    $region24: #{tpu_custom_call.1} parent=1 // pred_region
      %v71 = vld [vmem:[#allocation2] sm:$0xff]
      %v72 = vld [vmem:[#allocation3] sm:$0xff]
      %v73 = vsub.f32 %v72, %v71
      %v74 = vmul.f32 %v73, 0.5
      %v75 = vld [vmem:[#allocation4] sm:$0xff]
      %v76 = vsub.f32 %v75, %v71
      %v77 = vmul.f32 %v76, 0.5
      %v78 = vadd.f32 %v71, 1.0
      %v79 = vadd.f32 %v71, %v74
      %v80 = vadd.f32 %v79, %v77
      %v81 = vadd.f32 %v80, 1.0
      %v82 = vrcp.pop %v81
      %v83 = vmul.f32 %v78, %v82
      %v84 = vsub.f32 1.0, %v83
      %85 = vst.msk [vmem:[%s2] sm:$0xff] %vm54, %v84
    $region25: #{tpu_custom_call.1} parent=1 // pred_fallthru
      _
    // Predicated region
    $region26: #{tpu_custom_call.1} parent=1 // pred_check
      _
    $region27: #{tpu_custom_call.1} parent=1 // pred_check_branch
      %87 = sbr.rel (0) target = $region29
    $region28: #{tpu_custom_call.1} parent=1 // pred_region
      _
    $region29: #{tpu_custom_call.1} parent=1 // pred_fallthru
      _
    // Predicated region
    $region30: #{tpu_custom_call.1} parent=1 // pred_check
      _
    $region31: #{tpu_custom_call.1} parent=1 // pred_check_branch
      %89 = sbr.rel (0) target = $region33
    $region32: #{tpu_custom_call.1} parent=1 // pred_region
      _
    $region33: #{tpu_custom_call.1} parent=1 // pred_fallthru
      _
    %90 = vsyncpa [#allocation6], 1
    %91 = vsyncpa [#allocation8], 1

</llo_original>
